<compile_context>
chip_gen: v6e
topology: v6e:2x2x1
jax: 0.10.0
libtpu: 0.0.40
codegen_flags: <defaults>
</compile_context>

<pallas_src>
import jax
import jax.numpy as jnp
from jax.experimental import pallas as pl
from jax.experimental.pallas import tpu as pltpu


_LANE = 128      # lane width; the tiny OUT=2 layer is padded to this
_SUBLANE = 8


def _round_up(x, m):
    return (x + m - 1) // m * m


def _cdiv(a, b):
    return -(-a // b)


def _mlp_kernel(x_ref, w1_ref, b1_ref, w2_ref, b2_ref, w3_ref, b3_ref, o_ref):
    """Fused 3-layer MLP: bf16 MXU operands, f32 accumulation."""
    x = x_ref[...]                                                  # bf16 [bb, D_in]

    # ff1 + ReLU
    h1 = jnp.dot(x, w1_ref[...], preferred_element_type=jnp.float32) + b1_ref[...]
    h1 = jnp.maximum(h1, 0.0)

    # ff2
    h2 = jnp.dot(h1.astype(jnp.bfloat16), w2_ref[...],
                 preferred_element_type=jnp.float32) + b2_ref[...]

    # dp1: Dropout(0.2) is identity at inference time.
    # TODO(synk): training-mode dropout (scaled Bernoulli mask via pltpu.prng_*) not emitted.

    # ln1 + LeakyReLU (negative_slope = 0.01); layer is zero-padded to 128 lanes,
    # so the store is an unmasked, lane-dense vst.
    h3 = jnp.dot(h2.astype(jnp.bfloat16), w3_ref[...],
                 preferred_element_type=jnp.float32) + b3_ref[...]
    o_ref[...] = jnp.where(h3 > 0.0, h3, 0.01 * h3).astype(o_ref.dtype)


def _in_specs(bb, d_in, h1, h2, out_pad, single_buffer_weights):
    """BlockSpecs: x is tiled over the batch; weights/biases are grid-invariant."""
    const = lambda i: (0, 0)
    wkw = {}
    if single_buffer_weights:
        # Weight blocks never change across the grid -> single buffer is enough.
        wkw = dict(pipeline_mode=pl.Buffered(1))
    return [
        pl.BlockSpec((bb, d_in), lambda i: (i, 0)),                 # x tile
        pl.BlockSpec((d_in, h1), const, **wkw),                     # W1 (full)
        pl.BlockSpec((1, h1), const, **wkw),                        # b1
        pl.BlockSpec((h1, h2), const, **wkw),                       # W2 (full)
        pl.BlockSpec((1, h2), const, **wkw),                        # b2
        pl.BlockSpec((h2, out_pad), const, **wkw),                  # W3 (padded)
        pl.BlockSpec((1, out_pad), const, **wkw),                   # b3 (padded)
    ]


def _vmem_bytes_estimate(bb, d_in, h1, h2, out_pad, single_buffer_weights):
    bf16, f32 = 2, 4
    weights = (d_in * h1 + h1 * h2 + h2 * out_pad) * bf16 \
        + (h1 + h2 + out_pad) * f32
    wmult = 1 if single_buffer_weights else 2
    x_tiles = 2 * bb * d_in * bf16          # double-buffered input tile
    out_tiles = 2 * bb * out_pad * f32      # double-buffered output tile
    interm = bb * (h1 + h2) * (f32 + bf16)  # h1/h2 in f32 + their bf16 casts
    return wmult * weights + x_tiles + out_tiles + interm


def _pick_batch_tile(B, block_b):
    """Balanced, sublane-aligned batch tile.

    Keeps >= cdiv(B, block_b) grid steps (so big batches still split across
    v7x TensorCores) while avoiding a mostly-padding trailing tile.
    """
    steps = max(1, _cdiv(B, block_b))
    bb = _round_up(_cdiv(B, steps), _SUBLANE)
    bb = min(bb, _round_up(B, _SUBLANE))
    B_pad = _round_up(B, bb)
    return bb, B_pad


def classfier_inte_forward(feature, params, *, block_b=256):
    """feature: [B, D_in].  params: dict of w1,b1,w2,b2,w3,b3 (torch-transposed, [in,out])."""
    B, D_in = feature.shape
    w1, b1 = params["w1"], params["b1"]
    w2, b2 = params["w2"], params["b2"]
    w3, b3 = params["w3"], params["b3"]
    H1 = w1.shape[1]
    H2 = w2.shape[1]
    OUT = w3.shape[1]
    OUT_PAD = _round_up(max(OUT, _LANE), _LANE)

    bb, B_pad = _pick_batch_tile(B, block_b)
    grid = (B_pad // bb,)

    # bf16 matmul operands (halves weight DMA bytes; MXU is bf16-native).
    # In a real deployment these casts/pads would be done once, not per call.
    x = feature.astype(jnp.bfloat16)
    if B_pad != B:
        x = jnp.pad(x, ((0, B_pad - B), (0, 0)))
    w1b = w1.astype(jnp.bfloat16)
    w2b = w2.astype(jnp.bfloat16)
    b1f = b1.astype(jnp.float32)
    b2f = b2.astype(jnp.float32)
    # Lane-dense final layer: zero-pad OUT -> OUT_PAD (=128).
    w3b = jnp.zeros((H2, OUT_PAD), jnp.bfloat16).at[:, :OUT].set(w3.astype(jnp.bfloat16))
    b3f = jnp.zeros((1, OUT_PAD), jnp.float32).at[:, :OUT].set(b3.astype(jnp.float32))

    def build_and_call(single_buffer_weights):
        est = _vmem_bytes_estimate(bb, D_in, H1, H2, OUT_PAD, single_buffer_weights)
        vmem_limit = None
        if est * 1.25 > 32 * 1024 * 1024:      # above the scoped default -> budget explicitly
            vmem_limit = min(int(est * 1.25), 100 * 1024 * 1024)
        out = pl.pallas_call(
            _mlp_kernel,
            out_shape=jax.ShapeDtypeStruct((B_pad, OUT_PAD), jnp.float32),
            grid=grid,
            in_specs=_in_specs(bb, D_in, H1, H2, OUT_PAD, single_buffer_weights),
            out_specs=pl.BlockSpec((bb, OUT_PAD), lambda i: (i, 0)),
            compiler_params=pltpu.CompilerParams(
                dimension_semantics=("parallel",),
                vmem_limit_bytes=vmem_limit,
            ),
        )(x, w1b, b1f, w2b, b2f, w3b, b3f)
        # Force compile + execution here so any rejection of Buffered(1) (or a
        # VMEM-budget failure) surfaces inside the caller's try/except.
        return jax.block_until_ready(out)

    try:
        out = build_and_call(single_buffer_weights=True)
    except Exception:
        # Fallback if this Pallas build rejects Buffered(1): default double-buffering.
        out = build_and_call(single_buffer_weights=False)

    return out[:B, :OUT].astype(feature.dtype)


def init_params(key, d_in, h_mid, n_hidden, out_dim=2, dtype=jnp.float32):
    """Deterministic PyTorch-style init: U(-1/sqrt(fan_in), 1/sqrt(fan_in))."""
    keys = jax.random.split(key, 6)

    def lin(kw, kb, fan_in, fan_out):
        bound = 1.0 / jnp.sqrt(jnp.asarray(fan_in, dtype))
        w = jax.random.uniform(kw, (fan_in, fan_out), dtype, -bound, bound)
        b = jax.random.uniform(kb, (1, fan_out), dtype, -bound, bound)
        return w, b

    w1, b1 = lin(keys[0], keys[1], d_in, h_mid)
    w2, b2 = lin(keys[2], keys[3], h_mid, n_hidden)
    w3, b3 = lin(keys[4], keys[5], n_hidden, out_dim)
    return {"w1": w1, "b1": b1, "w2": w2, "b2": b2, "w3": w3, "b3": b3}


def reference_forward_f32(feature, params):
    """Pure-f32 JAX reference."""
    h1 = jnp.maximum(feature @ params["w1"] + params["b1"], 0.0)
    h2 = h1 @ params["w2"] + params["b2"]
    h3 = h2 @ params["w3"] + params["b3"]
    return jnp.where(h3 > 0.0, h3, 0.01 * h3)


def reference_forward_bf16(feature, params):
    """Reference mirroring the kernel's bf16-operand / f32-accumulate dots."""
    bf = jnp.bfloat16
    h1 = jnp.dot(feature.astype(bf), params["w1"].astype(bf),
                 preferred_element_type=jnp.float32) + params["b1"]
    h1 = jnp.maximum(h1, 0.0)
    h2 = jnp.dot(h1.astype(bf), params["w2"].astype(bf),
                 preferred_element_type=jnp.float32) + params["b2"]
    h3 = jnp.dot(h2.astype(bf), params["w3"].astype(bf),
                 preferred_element_type=jnp.float32) + params["b3"]
    return jnp.where(h3 > 0.0, h3, 0.01 * h3)


if __name__ == "__main__":
    # Small shapes consistent with the module structure:
    #   n_hidden = 32, num_cluster = 4  => D_in = n_hidden * (num_cluster - 1) = 96
    #   h_mid (the original 2048) scaled down to 64.
    n_hidden = 32
    num_cluster = 4
    d_in = n_hidden * (num_cluster - 1)   # 96
    h_mid = 64

    key = jax.random.PRNGKey(0)
    k_params, k_x1, k_x2 = jax.random.split(key, 3)
    params = init_params(k_params, d_in, h_mid, n_hidden, out_dim=2)

    # Case 1: batch = 12 (not a multiple of 8) -> single tile + batch padding.
    feat_small = jax.random.normal(k_x1, (12, d_in), dtype=jnp.float32)
    out_small = jax.block_until_ready(
        classfier_inte_forward(feat_small, params, block_b=256))
    assert out_small.shape == (12, 2), out_small.shape
    ref_bf16 = reference_forward_bf16(feat_small, params)
    assert jnp.allclose(out_small, ref_bf16, atol=2e-3, rtol=2e-3), \
        "small batch: mismatch vs bf16 reference"
    ref_f32 = reference_forward_f32(feat_small, params)
    assert jnp.allclose(out_small, ref_f32, atol=5e-2, rtol=5e-2), \
        "small batch: mismatch vs f32 reference"

    # Case 2: batch = 200 with block_b = 64 -> multi-step grid (balanced tiles)
    # + batch padding; exercises the "parallel" batch axis.
    feat_big = jax.random.normal(k_x2, (200, d_in), dtype=jnp.float32)
    out_big = jax.block_until_ready(
        classfier_inte_forward(feat_big, params, block_b=64))
    assert out_big.shape == (200, 2), out_big.shape
    ref_bf16_b = reference_forward_bf16(feat_big, params)
    assert jnp.allclose(out_big, ref_bf16_b, atol=2e-3, rtol=2e-3), \
        "large batch: mismatch vs bf16 reference"
    ref_f32_b = reference_forward_f32(feat_big, params)
    assert jnp.allclose(out_big, ref_f32_b, atol=5e-2, rtol=5e-2), \
        "large batch: mismatch vs f32 reference"

    print("KERNEL_OK")
</pallas_src>

<mosaic_0001>
module attributes {stable_mosaic.version = 11 : i64} {
  func.func @_mlp_kernel(%arg0: i32, %arg1: memref<16x96xbf16, #tpu.memory_space<vmem>>, %arg2: memref<96x64xbf16, #tpu.memory_space<vmem>>, %arg3: memref<1x64xf32, #tpu.memory_space<vmem>>, %arg4: memref<64x32xbf16, #tpu.memory_space<vmem>>, %arg5: memref<1x32xf32, #tpu.memory_space<vmem>>, %arg6: memref<32x128xbf16, #tpu.memory_space<vmem>>, %arg7: memref<1x128xf32, #tpu.memory_space<vmem>>, %arg8: memref<16x128xf32, #tpu.memory_space<vmem>>) attributes {dimension_semantics = [#tpu.dimension_semantics<parallel>], iteration_bounds = array<i64: 1>, scalar_prefetch = 0 : i64, scratch_operands = 0 : i64, tpu.core_type = #tpu.core_type<tc>, window_params = [{transform_indices = @transform_0, window_bounds = array<i64: 16, 96>}, {pipeline_mode = #tpu.pipeline_mode<synchronous>, transform_indices = @transform_1, window_bounds = array<i64: 96, 64>}, {pipeline_mode = #tpu.pipeline_mode<synchronous>, transform_indices = @transform_2, window_bounds = array<i64: 1, 64>}, {pipeline_mode = #tpu.pipeline_mode<synchronous>, transform_indices = @transform_3, window_bounds = array<i64: 64, 32>}, {pipeline_mode = #tpu.pipeline_mode<synchronous>, transform_indices = @transform_4, window_bounds = array<i64: 1, 32>}, {pipeline_mode = #tpu.pipeline_mode<synchronous>, transform_indices = @transform_5, window_bounds = array<i64: 32, 128>}, {pipeline_mode = #tpu.pipeline_mode<synchronous>, transform_indices = @transform_6, window_bounds = array<i64: 1, 128>}, {transform_indices = @transform_7, window_bounds = array<i64: 16, 128>}]} {
    %c0 = arith.constant 0 : index
    %c0_0 = arith.constant 0 : index
    %0 = vector.load %arg1[%c0, %c0_0] : memref<16x96xbf16, #tpu.memory_space<vmem>>, vector<16x96xbf16>
    %c0_1 = arith.constant 0 : index
    %c0_2 = arith.constant 0 : index
    %1 = vector.load %arg2[%c0_1, %c0_2] : memref<96x64xbf16, #tpu.memory_space<vmem>>, vector<96x64xbf16>
    %cst = arith.constant dense<0.000000e+00> : vector<16x64xf32>
    %2 = tpu.matmul %0, %1, %cst {dimension_numbers = #tpu.dot_dimension_numbers<[1], [0], [0], [1], [0, 0, 1, 1], [], []>} : vector<16x96xbf16>, vector<96x64xbf16>, vector<16x64xf32> -> vector<16x64xf32>
    %c0_3 = arith.constant 0 : index
    %c0_4 = arith.constant 0 : index
    %3 = vector.load %arg3[%c0_3, %c0_4] : memref<1x64xf32, #tpu.memory_space<vmem>>, vector<1x64xf32>
    %4 = vector.broadcast %3 : vector<1x64xf32> to vector<16x64xf32>
    %5 = arith.addf %2, %4 : vector<16x64xf32>
    %cst_5 = arith.constant 0.000000e+00 : f32
    %6 = vector.broadcast %cst_5 : f32 to vector<16x64xf32>
    %7 = arith.maximumf %5, %6 : vector<16x64xf32>
    %8 = arith.truncf %7 : vector<16x64xf32> to vector<16x64xbf16>
    %c0_6 = arith.constant 0 : index
    %c0_7 = arith.constant 0 : index
    %9 = vector.load %arg4[%c0_6, %c0_7] : memref<64x32xbf16, #tpu.memory_space<vmem>>, vector<64x32xbf16>
    %cst_8 = arith.constant dense<0.000000e+00> : vector<16x32xf32>
    %10 = tpu.matmul %8, %9, %cst_8 {dimension_numbers = #tpu.dot_dimension_numbers<[1], [0], [0], [1], [0, 0, 1, 1], [], []>} : vector<16x64xbf16>, vector<64x32xbf16>, vector<16x32xf32> -> vector<16x32xf32>
    %c0_9 = arith.constant 0 : index
    %c0_10 = arith.constant 0 : index
    %11 = vector.load %arg5[%c0_9, %c0_10] : memref<1x32xf32, #tpu.memory_space<vmem>>, vector<1x32xf32>
    %12 = vector.broadcast %11 : vector<1x32xf32> to vector<16x32xf32>
    %13 = arith.addf %10, %12 : vector<16x32xf32>
    %14 = arith.truncf %13 : vector<16x32xf32> to vector<16x32xbf16>
    %c0_11 = arith.constant 0 : index
    %c0_12 = arith.constant 0 : index
    %15 = vector.load %arg6[%c0_11, %c0_12] : memref<32x128xbf16, #tpu.memory_space<vmem>>, vector<32x128xbf16>
    %cst_13 = arith.constant dense<0.000000e+00> : vector<16x128xf32>
    %16 = tpu.matmul %14, %15, %cst_13 {dimension_numbers = #tpu.dot_dimension_numbers<[1], [0], [0], [1], [0, 0, 1, 1], [], []>} : vector<16x32xbf16>, vector<32x128xbf16>, vector<16x128xf32> -> vector<16x128xf32>
    %c0_14 = arith.constant 0 : index
    %c0_15 = arith.constant 0 : index
    %17 = vector.load %arg7[%c0_14, %c0_15] : memref<1x128xf32, #tpu.memory_space<vmem>>, vector<1x128xf32>
    %18 = vector.broadcast %17 : vector<1x128xf32> to vector<16x128xf32>
    %19 = arith.addf %16, %18 : vector<16x128xf32>
    %cst_16 = arith.constant 0.000000e+00 : f32
    %20 = vector.broadcast %cst_16 : f32 to vector<16x128xf32>
    %21 = arith.cmpf ogt, %19, %20 : vector<16x128xf32>
    %cst_17 = arith.constant 0.00999999977 : f32
    %22 = vector.broadcast %cst_17 : f32 to vector<16x128xf32>
    %23 = arith.mulf %22, %19 : vector<16x128xf32>
    %24 = arith.select %21, %19, %23 : vector<16x128xi1>, vector<16x128xf32>
    %c0_18 = arith.constant 0 : index
    %c0_19 = arith.constant 0 : index
    %25 = vector.load %arg8[%c0_18, %c0_19] : memref<16x128xf32, #tpu.memory_space<vmem>>, vector<16x128xf32>
    tpu.vector_store %arg8[%c0_18, %c0_19], %24 {strides = array<i32>} : memref<16x128xf32, #tpu.memory_space<vmem>>, vector<16x128xf32>,
    return
  }
  func.func @transform_0(%arg0: i32) -> (i32, i32) {
    %c0_i32 = arith.constant 0 : i32
    %c0_i32_0 = arith.constant 0 : i32
    return %arg0, %c0_i32 : i32, i32
  }
  func.func @transform_1(%arg0: i32) -> (i32, i32) {
    %c0_i32 = arith.constant 0 : i32
    %c0_i32_0 = arith.constant 0 : i32
    %c0_i32_1 = arith.constant 0 : i32
    return %c0_i32, %c0_i32_0 : i32, i32
  }
  func.func @transform_2(%arg0: i32) -> (i32, i32) {
    %c0_i32 = arith.constant 0 : i32
    %c0_i32_0 = arith.constant 0 : i32
    %c0_i32_1 = arith.constant 0 : i32
    return %c0_i32, %c0_i32_0 : i32, i32
  }
  func.func @transform_3(%arg0: i32) -> (i32, i32) {
    %c0_i32 = arith.constant 0 : i32
    %c0_i32_0 = arith.constant 0 : i32
    %c0_i32_1 = arith.constant 0 : i32
    return %c0_i32, %c0_i32_0 : i32, i32
  }
  func.func @transform_4(%arg0: i32) -> (i32, i32) {
    %c0_i32 = arith.constant 0 : i32
    %c0_i32_0 = arith.constant 0 : i32
    %c0_i32_1 = arith.constant 0 : i32
    return %c0_i32, %c0_i32_0 : i32, i32
  }
  func.func @transform_5(%arg0: i32) -> (i32, i32) {
    %c0_i32 = arith.constant 0 : i32
    %c0_i32_0 = arith.constant 0 : i32
    %c0_i32_1 = arith.constant 0 : i32
    return %c0_i32, %c0_i32_0 : i32, i32
  }
  func.func @transform_6(%arg0: i32) -> (i32, i32) {
    %c0_i32 = arith.constant 0 : i32
    %c0_i32_0 = arith.constant 0 : i32
    %c0_i32_1 = arith.constant 0 : i32
    return %c0_i32, %c0_i32_0 : i32, i32
  }
  func.func @transform_7(%arg0: i32) -> (i32, i32) {
    %c0_i32 = arith.constant 0 : i32
    %c0_i32_0 = arith.constant 0 : i32
    return %arg0, %c0_i32 : i32, i32
  }
}

module attributes {stable_mosaic.version = 11 : i64} {
  func.func @_mlp_kernel(%arg0: i32, %arg1: memref<16x96xbf16, #tpu.memory_space<vmem>>, %arg2: memref<96x64xbf16, #tpu.memory_space<vmem>>, %arg3: memref<1x64xf32, #tpu.memory_space<vmem>>, %arg4: memref<64x32xbf16, #tpu.memory_space<vmem>>, %arg5: memref<1x32xf32, #tpu.memory_space<vmem>>, %arg6: memref<32x128xbf16, #tpu.memory_space<vmem>>, %arg7: memref<1x128xf32, #tpu.memory_space<vmem>>, %arg8: memref<16x128xf32, #tpu.memory_space<vmem>>) attributes {dimension_semantics = [#tpu.dimension_semantics<parallel>], iteration_bounds = array<i64: 1>, scalar_prefetch = 0 : i64, scratch_operands = 0 : i64, tpu.core_type = #tpu.core_type<tc>, window_params = [{transform_indices = @transform_0, window_bounds = array<i64: 16, 96>}, {pipeline_mode = #tpu.pipeline_mode<synchronous>, transform_indices = @transform_1, window_bounds = array<i64: 96, 64>}, {pipeline_mode = #tpu.pipeline_mode<synchronous>, transform_indices = @transform_2, window_bounds = array<i64: 1, 64>}, {pipeline_mode = #tpu.pipeline_mode<synchronous>, transform_indices = @transform_3, window_bounds = array<i64: 64, 32>}, {pipeline_mode = #tpu.pipeline_mode<synchronous>, transform_indices = @transform_4, window_bounds = array<i64: 1, 32>}, {pipeline_mode = #tpu.pipeline_mode<synchronous>, transform_indices = @transform_5, window_bounds = array<i64: 32, 128>}, {pipeline_mode = #tpu.pipeline_mode<synchronous>, transform_indices = @transform_6, window_bounds = array<i64: 1, 128>}, {transform_indices = @transform_7, window_bounds = array<i64: 16, 128>}]} {
    %c0 = arith.constant 0 : index
    %c0_0 = arith.constant 0 : index
    %0 = vector.load %arg1[%c0, %c0_0] : memref<16x96xbf16, #tpu.memory_space<vmem>>, vector<16x96xbf16>
    %c0_1 = arith.constant 0 : index
    %c0_2 = arith.constant 0 : index
    %1 = vector.load %arg2[%c0_1, %c0_2] : memref<96x64xbf16, #tpu.memory_space<vmem>>, vector<96x64xbf16>
    %cst = arith.constant dense<0.000000e+00> : vector<16x64xf32>
    %2 = tpu.matmul %0, %1, %cst {dimension_numbers = #tpu.dot_dimension_numbers<[1], [0], [0], [1], [0, 0, 1, 1], [], []>} : vector<16x96xbf16>, vector<96x64xbf16>, vector<16x64xf32> -> vector<16x64xf32>
    %c0_3 = arith.constant 0 : index
    %c0_4 = arith.constant 0 : index
    %3 = vector.load %arg3[%c0_3, %c0_4] : memref<1x64xf32, #tpu.memory_space<vmem>>, vector<1x64xf32>
    %4 = vector.broadcast %3 : vector<1x64xf32> to vector<16x64xf32>
    %5 = arith.addf %2, %4 : vector<16x64xf32>
    %cst_5 = arith.constant 0.000000e+00 : f32
    %6 = vector.broadcast %cst_5 : f32 to vector<16x64xf32>
    %7 = arith.maximumf %5, %6 : vector<16x64xf32>
    %8 = arith.truncf %7 : vector<16x64xf32> to vector<16x64xbf16>
    %c0_6 = arith.constant 0 : index
    %c0_7 = arith.constant 0 : index
    %9 = vector.load %arg4[%c0_6, %c0_7] : memref<64x32xbf16, #tpu.memory_space<vmem>>, vector<64x32xbf16>
    %cst_8 = arith.constant dense<0.000000e+00> : vector<16x32xf32>
    %10 = tpu.matmul %8, %9, %cst_8 {dimension_numbers = #tpu.dot_dimension_numbers<[1], [0], [0], [1], [0, 0, 1, 1], [], []>} : vector<16x64xbf16>, vector<64x32xbf16>, vector<16x32xf32> -> vector<16x32xf32>
    %c0_9 = arith.constant 0 : index
    %c0_10 = arith.constant 0 : index
    %11 = vector.load %arg5[%c0_9, %c0_10] : memref<1x32xf32, #tpu.memory_space<vmem>>, vector<1x32xf32>
    %12 = vector.broadcast %11 : vector<1x32xf32> to vector<16x32xf32>
    %13 = arith.addf %10, %12 : vector<16x32xf32>
    %14 = arith.truncf %13 : vector<16x32xf32> to vector<16x32xbf16>
    %c0_11 = arith.constant 0 : index
    %c0_12 = arith.constant 0 : index
    %15 = vector.load %arg6[%c0_11, %c0_12] : memref<32x128xbf16, #tpu.memory_space<vmem>>, vector<32x128xbf16>
    %cst_13 = arith.constant dense<0.000000e+00> : vector<16x128xf32>
    %16 = tpu.matmul %14, %15, %cst_13 {dimension_numbers = #tpu.dot_dimension_numbers<[1], [0], [0], [1], [0, 0, 1, 1], [], []>} : vector<16x32xbf16>, vector<32x128xbf16>, vector<16x128xf32> -> vector<16x128xf32>
    %c0_14 = arith.constant 0 : index
    %c0_15 = arith.constant 0 : index
    %17 = vector.load %arg7[%c0_14, %c0_15] : memref<1x128xf32, #tpu.memory_space<vmem>>, vector<1x128xf32>
    %18 = vector.broadcast %17 : vector<1x128xf32> to vector<16x128xf32>
    %19 = arith.addf %16, %18 : vector<16x128xf32>
    %cst_16 = arith.constant 0.000000e+00 : f32
    %20 = vector.broadcast %cst_16 : f32 to vector<16x128xf32>
    %21 = arith.cmpf ogt, %19, %20 : vector<16x128xf32>
    %cst_17 = arith.constant 0.00999999977 : f32
    %22 = vector.broadcast %cst_17 : f32 to vector<16x128xf32>
    %23 = arith.mulf %22, %19 : vector<16x128xf32>
    %24 = arith.select %21, %19, %23 : vector<16x128xi1>, vector<16x128xf32>
    %c0_18 = arith.constant 0 : index
    %c0_19 = arith.constant 0 : index
    %25 = vector.load %arg8[%c0_18, %c0_19] : memref<16x128xf32, #tpu.memory_space<vmem>>, vector<16x128xf32>
    tpu.vector_store %arg8[%c0_18, %c0_19], %24 {strides = array<i32>} : memref<16x128xf32, #tpu.memory_space<vmem>>, vector<16x128xf32>,
    return
  }
  func.func @transform_0(%arg0: i32) -> (i32, i32) {
    %c0_i32 = arith.constant 0 : i32
    %c0_i32_0 = arith.constant 0 : i32
    return %arg0, %c0_i32 : i32, i32
  }
  func.func @transform_1(%arg0: i32) -> (i32, i32) {
    %c0_i32 = arith.constant 0 : i32
    %c0_i32_0 = arith.constant 0 : i32
    %c0_i32_1 = arith.constant 0 : i32
    return %c0_i32, %c0_i32_0 : i32, i32
  }
  func.func @transform_2(%arg0: i32) -> (i32, i32) {
    %c0_i32 = arith.constant 0 : i32
    %c0_i32_0 = arith.constant 0 : i32
    %c0_i32_1 = arith.constant 0 : i32
    return %c0_i32, %c0_i32_0 : i32, i32
  }
  func.func @transform_3(%arg0: i32) -> (i32, i32) {
    %c0_i32 = arith.constant 0 : i32
    %c0_i32_0 = arith.constant 0 : i32
    %c0_i32_1 = arith.constant 0 : i32
    return %c0_i32, %c0_i32_0 : i32, i32
  }
  func.func @transform_4(%arg0: i32) -> (i32, i32) {
    %c0_i32 = arith.constant 0 : i32
    %c0_i32_0 = arith.constant 0 : i32
    %c0_i32_1 = arith.constant 0 : i32
    return %c0_i32, %c0_i32_0 : i32, i32
  }
  func.func @transform_5(%arg0: i32) -> (i32, i32) {
    %c0_i32 = arith.constant 0 : i32
    %c0_i32_0 = arith.constant 0 : i32
    %c0_i32_1 = arith.constant 0 : i32
    return %c0_i32, %c0_i32_0 : i32, i32
  }
  func.func @transform_6(%arg0: i32) -> (i32, i32) {
    %c0_i32 = arith.constant 0 : i32
    %c0_i32_0 = arith.constant 0 : i32
    %c0_i32_1 = arith.constant 0 : i32
    return %c0_i32, %c0_i32_0 : i32, i32
  }
  func.func @transform_7(%arg0: i32) -> (i32, i32) {
    %c0_i32 = arith.constant 0 : i32
    %c0_i32_0 = arith.constant 0 : i32
    return %arg0, %c0_i32 : i32, i32
  }
}

</mosaic_0001>

<llo_original>
// kernel: tpu_custom_call.1
$region0: #{tpu_custom_call.1}
  #allocation0 [shape = 'u32[]', space=smem, size = 0x4, offset = 0x4, fixed_abs, tag = 'smem constant byte address 0x4 - core index']
  #allocation1 [shape = 'u32[144,128]{1,0:T(1,128)}', space=vmem, size = 0x12000, scoped, tag = 'internal scratch']
  %s0 = inlined_call_operand.vmem [shape: bf16[16,96], index: 0, kind: input, shape index: {}]
  %s1 = inlined_call_operand.vmem [shape: bf16[96,64], index: 1, kind: input, shape index: {}]
  %s2 = inlined_call_operand.vmem [shape: f32[1,64], index: 2, kind: input, shape index: {}]
  %s3 = inlined_call_operand.vmem [shape: bf16[64,32], index: 3, kind: input, shape index: {}]
  %s4 = inlined_call_operand.vmem [shape: f32[1,32], index: 4, kind: input, shape index: {}]
  %s5 = inlined_call_operand.vmem [shape: bf16[32,128], index: 5, kind: input, shape index: {}]
  %s6 = inlined_call_operand.vmem [shape: f32[1,128], index: 6, kind: input, shape index: {}]
  %s7 = inlined_call_operand.hbm [shape: f32[16,128], index: 7, kind: output, shape index: {}]
  %s8 = sld [smem:[#allocation0]]
  $region38: #{tpu_custom_call.1} parent=0
    _
  %s10 = ssub.s32 1, %s8
  %s11 = scalar_select 0, %s10, %s8
  $region1: #{tpu_custom_call.1} parent=0
    #allocation2 [shape = 'u8[8192]{0}', space=vmem, size = 0x2000, scoped, tag = 'output window, operand 0, single buffered']
    #allocation3 [shape = 's32[1]{0}', space=sflag, size = 0x4, scoped, tag = 'scoped memory for tpu_custom_call.1']
    %12 = vsyncpa [#allocation3], 0
    // Predicated region
    $region2: #{tpu_custom_call.1} parent=1 // pred_check
      _
    $region3: #{tpu_custom_call.1} parent=1 // pred_check_branch
      %14 = sbr.rel (0) target = $region5
    $region4: #{tpu_custom_call.1} parent=1 // pred_region
      _
    $region5: #{tpu_custom_call.1} parent=1 // pred_fallthru
      _
    // Predicated region
    $region6: #{tpu_custom_call.1} parent=1 // pred_check
      _
    $region7: #{tpu_custom_call.1} parent=1 // pred_check_branch
      %16 = sbr.rel (0) target = $region9
    $region8: #{tpu_custom_call.1} parent=1 // pred_region
      _
    $region9: #{tpu_custom_call.1} parent=1 // pred_fallthru
      _
    // Predicated region
    $region10: #{tpu_custom_call.1} parent=1 // pred_check
      _
    $region11: #{tpu_custom_call.1} parent=1 // pred_check_branch
      %18 = sbr.rel (0) target = $region13
    $region12: #{tpu_custom_call.1} parent=1 // pred_region
      _
    $region13: #{tpu_custom_call.1} parent=1 // pred_fallthru
      _
    // Predicated region
    $region14: #{tpu_custom_call.1} parent=1 // pred_check
      _
    $region15: #{tpu_custom_call.1} parent=1 // pred_check_branch
      %20 = sbr.rel (0) target = $region17
    $region16: #{tpu_custom_call.1} parent=1 // pred_region
      _
    $region17: #{tpu_custom_call.1} parent=1 // pred_fallthru
      _
    // Predicated region
    $region18: #{tpu_custom_call.1} parent=1 // pred_check
      _
    $region19: #{tpu_custom_call.1} parent=1 // pred_check_branch
      %22 = sbr.rel (0) target = $region21
    $region20: #{tpu_custom_call.1} parent=1 // pred_region
      _
    $region21: #{tpu_custom_call.1} parent=1 // pred_fallthru
      _
    // Predicated region
    $region22: #{tpu_custom_call.1} parent=1 // pred_check
      _
    $region23: #{tpu_custom_call.1} parent=1 // pred_check_branch
      %24 = sbr.rel (0) target = $region25
    $region24: #{tpu_custom_call.1} parent=1 // pred_region
      _
    $region25: #{tpu_custom_call.1} parent=1 // pred_fallthru
      _
    // Predicated region
    $region26: #{tpu_custom_call.1} parent=1 // pred_check
      _
    $region27: #{tpu_custom_call.1} parent=1 // pred_check_branch
      %26 = sbr.rel (0) target = $region29
    $region28: #{tpu_custom_call.1} parent=1 // pred_region
      _
    $region29: #{tpu_custom_call.1} parent=1 // pred_fallthru
      _
    %v28 = vld [vmem:[%s0] sm:$0xf]
    %v29 = vld [vmem:[%s0 + $0x4] sm:$0xf]
    %v30 = vld [vmem:[%s1] sm:$0xf]
    %v31 = vld [vmem:[%s1 + $0x4] sm:$0xf]
    %v32 = vld [vmem:[%s1 + $0x8] sm:$0xf]
    %v33 = vld [vmem:[%s1 + $0xc] sm:$0xf]
    %v34 = vld [vmem:[%s1 + $0x10] sm:$0xf]
    %v35 = vld [vmem:[%s1 + $0x14] sm:$0xf]
    %v36 = vld [vmem:[%s1 + $0x18] sm:$0xf]
    %v37 = vld [vmem:[%s1 + $0x1c] sm:$0xf]
    %v38 = vld [vmem:[%s1 + $0x20] sm:$0xf]
    %v39 = vld [vmem:[%s1 + $0x24] sm:$0xf]
    %v40 = vld [vmem:[%s1 + $0x28] sm:$0xf]
    %v41 = vld [vmem:[%s1 + $0x2c] sm:$0xf]
    %v42 = vld [vmem:[%s2] sm:$0x1]
    %v44 = vlaneseq
    %v45 = vshrl.u32 %v44, 7
    %v46 = vsub.s32 0, %v45
    %v47 = vrot.slane %v42, %v46
    %v51 = vunpack.c.l.b16 %v28
    %v52 = vunpack.c.l.b16 %v29
    %v53 = vpack.c.b16 %v52, %v51
    %v66 = vunpack.c.l.b16 %v30
    %v67 = vunpack.c.l.b16 %v31
    %v68 = vunpack.c.l.b16 %v32
    %v69 = vunpack.c.l.b16 %v33
    %v70 = vunpack.c.l.b16 %v34
    %v71 = vunpack.c.l.b16 %v35
    %v72 = vunpack.c.l.b16 %v36
    %v73 = vunpack.c.l.b16 %v37
    %v74 = vunpack.c.l.b16 %v38
    %v75 = vunpack.c.l.b16 %v39
    %v76 = vunpack.c.l.b16 %v40
    %v77 = vunpack.c.l.b16 %v41
    %v78 = vpack.c.b16 %v67, %v66
    %v79 = vpack.c.b16 %v69, %v68
    %v80 = vpack.c.b16 %v71, %v70
    %v81 = vpack.c.b16 %v73, %v72
    %v82 = vpack.c.b16 %v75, %v74
    %v83 = vpack.c.b16 %v77, %v76
    %vm90 = vcmask 785408
    %v92 = vsel %vm90, %v53, 0
    %94 = vmatprep.subr.bf16.mxu0 0
    %95 = vmatpush1.bf16.msra.mxu0 0
    %96 = vmatprep.subr.bf16.mxu0 0
    %97 = vmatpush1.bf16.msra.mxu0 0
    %98 = vmatprep.subr.bf16.mxu0 0
    %99 = vmatpush1.bf16.msra.mxu0 %v83
    %100 = vmatprep.subr.bf16.mxu0 0
    %101 = vmatpush1.bf16.msra.mxu0 %v82
    %102 = vmatprep.subr.bf16.mxu0 0
    %103 = vmatpush1.bf16.msra.mxu0 %v81
    %104 = vmatprep.subr.bf16.mxu0 0
    %105 = vmatpush1.bf16.msra.mxu0 %v80
    %106 = vmatprep.subr.bf16.mxu0 0
    %107 = vmatpush1.bf16.msra.mxu0 %v79
    %108 = vmatprep.subr.bf16.mxu0 0
    %109 = vmatpush1.bf16.msra.mxu0 %v78
    %110 = vmatprep.subr.bf16.mxu0 0
    %111 = vmatpush2.bf16.msra.mxu0 0
    %112 = vmatprep.subr.bf16.mxu0 0
    %113 = vmatpush2.bf16.msra.mxu0 0
    %114 = vmatprep.subr.bf16.mxu0 0
    %115 = vmatpush2.bf16.msra.mxu0 0
    %116 = vmatprep.subr.bf16.mxu0 0
    %117 = vmatpush2.bf16.msra.mxu0 0
    %118 = vmatprep.subr.bf16.mxu0 0
    %119 = vmatpush2.bf16.msra.mxu0 0
    %120 = vmatprep.subr.bf16.mxu0 0
    %121 = vmatpush2.bf16.msra.mxu0 0
    %122 = vmatprep.subr.bf16.mxu0 0
    %123 = vmatpush2.bf16.msra.mxu0 0
    %124 = vmatprep.subr.bf16.mxu0 0
    %125 = vmatpush2.bf16.msra.mxu0 0
    %126 = vmatprep.mubr.bf16.mxu0 0
    %127 = vmatmul.mubr.bf16.gmra.mxu0 %v92
    %v128 = vpop.f32.mrf.mxu0
    %v129 = vadd.f32 %v47, %v128
    %v130 = vpop.f32.mrf.mxu0
    %v131 = vpop.f32.mrf.mxu0
    %v132 = vadd.f32 %v47, %v131
    %v133 = vpop.f32.mrf.mxu0
    %134 = vdwg.mxu0
    %v135 = vmax.f32 %v129, 0.0
    %v136 = vmax.f32 %v132, 0.0
    %v137 = vpack.c.bf16 %v136, %v135
    %v138 = vld [vmem:[%s3] sm:$0xf]
    %v139 = vld [vmem:[%s3 + $0x4] sm:$0xf]
    %v140 = vld [vmem:[%s3 + $0x8] sm:$0xf]
    %v141 = vld [vmem:[%s3 + $0xc] sm:$0xf]
    %v142 = vld [vmem:[%s3 + $0x10] sm:$0xf]
    %v143 = vld [vmem:[%s3 + $0x14] sm:$0xf]
    %v144 = vld [vmem:[%s3 + $0x18] sm:$0xf]
    %v145 = vld [vmem:[%s3 + $0x1c] sm:$0xf]
    %v146 = vld [vmem:[%s4] sm:$0x1]
    %v148 = vlaneseq
    %v149 = vshrl.u32 %v148, 7
    %v150 = vsub.s32 0, %v149
    %v151 = vrot.slane %v146, %v150
    %v161 = vunpack.c.l.b16 %v138
    %v162 = vunpack.c.l.b16 %v139
    %v163 = vunpack.c.l.b16 %v140
    %v164 = vunpack.c.l.b16 %v141
    %v165 = vunpack.c.l.b16 %v142
    %v166 = vunpack.c.l.b16 %v143
    %v167 = vunpack.c.l.b16 %v144
    %v168 = vunpack.c.l.b16 %v145
    %v169 = vpack.c.b16 %v162, %v161
    %v170 = vpack.c.b16 %v164, %v163
    %v171 = vpack.c.b16 %v166, %v165
    %v172 = vpack.c.b16 %v168, %v167
    %vm177 = vcmask 523264
    %v179 = vsel %vm177, %v137, 0
    %181 = vmatprep.subr.bf16.mxu0 0
    %182 = vmatpush1.bf16.msra.mxu0 0
    %183 = vmatprep.subr.bf16.mxu0 0
    %184 = vmatpush1.bf16.msra.mxu0 0
    %185 = vmatprep.subr.bf16.mxu0 0
    %186 = vmatpush1.bf16.msra.mxu0 0
    %187 = vmatprep.subr.bf16.mxu0 0
    %188 = vmatpush1.bf16.msra.mxu0 0
    %189 = vmatprep.subr.bf16.mxu0 0
    %190 = vmatpush1.bf16.msra.mxu0 %v172
    %191 = vmatprep.subr.bf16.mxu0 0
    %192 = vmatpush1.bf16.msra.mxu0 %v171
    %193 = vmatprep.subr.bf16.mxu0 0
    %194 = vmatpush1.bf16.msra.mxu0 %v170
    %195 = vmatprep.subr.bf16.mxu0 0
    %196 = vmatpush1.bf16.msra.mxu0 %v169
    %197 = vmatprep.subr.bf16.mxu0 0
    %198 = vmatpush2.bf16.msra.mxu0 0
    %199 = vmatprep.subr.bf16.mxu0 0
    %200 = vmatpush2.bf16.msra.mxu0 0
    %201 = vmatprep.subr.bf16.mxu0 0
    %202 = vmatpush2.bf16.msra.mxu0 0
    %203 = vmatprep.subr.bf16.mxu0 0
    %204 = vmatpush2.bf16.msra.mxu0 0
    %205 = vmatprep.subr.bf16.mxu0 0
    %206 = vmatpush2.bf16.msra.mxu0 0
    %207 = vmatprep.subr.bf16.mxu0 0
    %208 = vmatpush2.bf16.msra.mxu0 0
    %209 = vmatprep.subr.bf16.mxu0 0
    %210 = vmatpush2.bf16.msra.mxu0 0
    %211 = vmatprep.subr.bf16.mxu0 0
    %212 = vmatpush2.bf16.msra.mxu0 0
    %213 = vmatprep.mubr.bf16.mxu0 0
    %214 = vmatmul.mubr.bf16.gmra.mxu0 %v179
    %v215 = vpop.f32.mrf.mxu0
    %v216 = vadd.f32 %v151, %v215
    %v217 = vpop.f32.mrf.mxu0
    %v218 = vpop.f32.mrf.mxu0
    %v219 = vadd.f32 %v151, %v218
    %v220 = vpop.f32.mrf.mxu0
    %221 = vdwg.mxu0
    %v222 = vpack.c.bf16 %v219, %v216
    %v223 = vld [vmem:[%s5] sm:$0xf]
    %v224 = vld [vmem:[%s5 + $0x4] sm:$0xf]
    %v225 = vld [vmem:[%s5 + $0x8] sm:$0xf]
    %v226 = vld [vmem:[%s5 + $0xc] sm:$0xf]
    %v227 = vld [vmem:[%s6] sm:$0x1]
    %v229 = vlaneseq
    %v230 = vshrl.u32 %v229, 7
    %v231 = vsub.s32 0, %v230
    %v232 = vrot.slane %v227, %v231
    %v238 = vunpack.c.l.b16 %v223
    %v239 = vunpack.c.l.b16 %v224
    %v240 = vunpack.c.l.b16 %v225
    %v241 = vunpack.c.l.b16 %v226
    %v242 = vpack.c.b16 %v239, %v238
    %v243 = vpack.c.b16 %v241, %v240
    %vm246 = vcmask 261120
    %v248 = vsel %vm246, %v222, 0
    %250 = vmatprep.subr.bf16.mxu0 0
    %251 = vmatpush1.bf16.msra.mxu0 0
    %252 = vmatprep.subr.bf16.mxu0 0
    %253 = vmatpush1.bf16.msra.mxu0 0
    %254 = vmatprep.subr.bf16.mxu0 0
    %255 = vmatpush1.bf16.msra.mxu0 0
    %256 = vmatprep.subr.bf16.mxu0 0
    %257 = vmatpush1.bf16.msra.mxu0 0
    %258 = vmatprep.subr.bf16.mxu0 0
    %259 = vmatpush1.bf16.msra.mxu0 0
    %260 = vmatprep.subr.bf16.mxu0 0
    %261 = vmatpush1.bf16.msra.mxu0 0
    %262 = vmatprep.subr.bf16.mxu0 0
    %263 = vmatpush1.bf16.msra.mxu0 %v243
    %264 = vmatprep.subr.bf16.mxu0 0
    %265 = vmatpush1.bf16.msra.mxu0 %v242
    %266 = vmatprep.subr.bf16.mxu0 0
    %267 = vmatpush2.bf16.msra.mxu0 0
    %268 = vmatprep.subr.bf16.mxu0 0
    %269 = vmatpush2.bf16.msra.mxu0 0
    %270 = vmatprep.subr.bf16.mxu0 0
    %271 = vmatpush2.bf16.msra.mxu0 0
    %272 = vmatprep.subr.bf16.mxu0 0
    %273 = vmatpush2.bf16.msra.mxu0 0
    %274 = vmatprep.subr.bf16.mxu0 0
    %275 = vmatpush2.bf16.msra.mxu0 0
    %276 = vmatprep.subr.bf16.mxu0 0
    %277 = vmatpush2.bf16.msra.mxu0 0
    %278 = vmatprep.subr.bf16.mxu0 0
    %279 = vmatpush2.bf16.msra.mxu0 0
    %280 = vmatprep.subr.bf16.mxu0 0
    %281 = vmatpush2.bf16.msra.mxu0 0
    %282 = vmatprep.mubr.bf16.mxu0 0
    %283 = vmatmul.mubr.bf16.gmra.mxu0 %v248
    %v284 = vpop.f32.mrf.mxu0
    %v285 = vadd.f32 %v232, %v284
    %v286 = vpop.f32.mrf.mxu0
    %v287 = vpop.f32.mrf.mxu0
    %v288 = vadd.f32 %v232, %v287
    %v289 = vpop.f32.mrf.mxu0
    %290 = vdwg.mxu0
    %vm291 = vcmp.gt.f32.partialorder %v285, 0.0
    %vm292 = vcmp.gt.f32.partialorder %v288, 0.0
    %v293 = vmul.f32 %v285, 0.01
    %v294 = vmul.f32 %v288, 0.01
    %v295 = vsel %vm291, %v285, %v293
    %v296 = vsel %vm292, %v288, %v294
    %297 = vst [vmem:[#allocation2] sm:$0xff] %v295
    %298 = vst [vmem:[#allocation2 + $0x8] sm:$0xff] %v296
    // Predicated region
    $region30: #{tpu_custom_call.1} parent=1 // pred_check
      _
    $region31: #{tpu_custom_call.1} parent=1 // pred_check_branch
      %300 = sbr.rel (0) target = $region33
    $region32: #{tpu_custom_call.1} parent=1 // pred_region
      %s302 = ssub.s32 256, 256
      %303 = vsyncadd [#allocation3], %s302
      %s304 = sshll.u32 [#allocation2], 4
      %s305 = int_to_ptr.vmem [resolvable:$true] %s304
      %310 = dma.vmem_to_hbm [thread:$0]  %s305, 256, %s7, [#allocation3], 128, 128, 8
    $region33: #{tpu_custom_call.1} parent=1 // pred_fallthru
      _
    // Predicated region
    $region34: #{tpu_custom_call.1} parent=1 // pred_check
      _
    $region35: #{tpu_custom_call.1} parent=1 // pred_check_branch
      %312 = sbr.rel (0) target = $region37
    $region36: #{tpu_custom_call.1} parent=1 // pred_region
      %313 = dma.done [#allocation3], 256
    $region37: #{tpu_custom_call.1} parent=1 // pred_fallthru
      _
    %314 = vsyncpa [#allocation3], 1

// kernel: tpu_custom_call.1
$region0: #{tpu_custom_call.1}
  #allocation0 [shape = 'u32[]', space=smem, size = 0x4, offset = 0x4, fixed_abs, tag = 'smem constant byte address 0x4 - core index']
  #allocation1 [shape = 'u32[144,128]{1,0:T(1,128)}', space=vmem, size = 0x12000, scoped, tag = 'internal scratch']
  %s0 = inlined_call_operand.vmem [shape: bf16[16,96], index: 0, kind: input, shape index: {}]
  %s1 = inlined_call_operand.vmem [shape: bf16[96,64], index: 1, kind: input, shape index: {}]
  %s2 = inlined_call_operand.vmem [shape: f32[1,64], index: 2, kind: input, shape index: {}]
  %s3 = inlined_call_operand.vmem [shape: bf16[64,32], index: 3, kind: input, shape index: {}]
  %s4 = inlined_call_operand.vmem [shape: f32[1,32], index: 4, kind: input, shape index: {}]
  %s5 = inlined_call_operand.vmem [shape: bf16[32,128], index: 5, kind: input, shape index: {}]
  %s6 = inlined_call_operand.vmem [shape: f32[1,128], index: 6, kind: input, shape index: {}]
  %s7 = inlined_call_operand.hbm [shape: f32[16,128], index: 7, kind: output, shape index: {}]
  %s8 = sld [smem:[#allocation0]]
  $region38: #{tpu_custom_call.1} parent=0
    _
  %s10 = ssub.s32 1, %s8
  %s11 = scalar_select 0, %s10, %s8
  $region1: #{tpu_custom_call.1} parent=0
    #allocation2 [shape = 'u8[8192]{0}', space=vmem, size = 0x2000, scoped, tag = 'output window, operand 0, single buffered']
    #allocation3 [shape = 's32[1]{0}', space=sflag, size = 0x4, scoped, tag = 'scoped memory for tpu_custom_call.1']
    %12 = vsyncpa [#allocation3], 0
    // Predicated region
    $region2: #{tpu_custom_call.1} parent=1 // pred_check
      _
    $region3: #{tpu_custom_call.1} parent=1 // pred_check_branch
      %14 = sbr.rel (0) target = $region5
    $region4: #{tpu_custom_call.1} parent=1 // pred_region
      _
    $region5: #{tpu_custom_call.1} parent=1 // pred_fallthru
      _
    // Predicated region
    $region6: #{tpu_custom_call.1} parent=1 // pred_check
      _
    $region7: #{tpu_custom_call.1} parent=1 // pred_check_branch
      %16 = sbr.rel (0) target = $region9
    $region8: #{tpu_custom_call.1} parent=1 // pred_region
      _
    $region9: #{tpu_custom_call.1} parent=1 // pred_fallthru
      _
    // Predicated region
    $region10: #{tpu_custom_call.1} parent=1 // pred_check
      _
    $region11: #{tpu_custom_call.1} parent=1 // pred_check_branch
      %18 = sbr.rel (0) target = $region13
    $region12: #{tpu_custom_call.1} parent=1 // pred_region
      _
    $region13: #{tpu_custom_call.1} parent=1 // pred_fallthru
      _
    // Predicated region
    $region14: #{tpu_custom_call.1} parent=1 // pred_check
      _
    $region15: #{tpu_custom_call.1} parent=1 // pred_check_branch
      %20 = sbr.rel (0) target = $region17
    $region16: #{tpu_custom_call.1} parent=1 // pred_region
      _
    $region17: #{tpu_custom_call.1} parent=1 // pred_fallthru
      _
    // Predicated region
    $region18: #{tpu_custom_call.1} parent=1 // pred_check
      _
    $region19: #{tpu_custom_call.1} parent=1 // pred_check_branch
      %22 = sbr.rel (0) target = $region21
    $region20: #{tpu_custom_call.1} parent=1 // pred_region
      _
    $region21: #{tpu_custom_call.1} parent=1 // pred_fallthru
      _
    // Predicated region
    $region22: #{tpu_custom_call.1} parent=1 // pred_check
      _
    $region23: #{tpu_custom_call.1} parent=1 // pred_check_branch
      %24 = sbr.rel (0) target = $region25
    $region24: #{tpu_custom_call.1} parent=1 // pred_region
      _
    $region25: #{tpu_custom_call.1} parent=1 // pred_fallthru
      _
    // Predicated region
    $region26: #{tpu_custom_call.1} parent=1 // pred_check
      _
    $region27: #{tpu_custom_call.1} parent=1 // pred_check_branch
      %26 = sbr.rel (0) target = $region29
    $region28: #{tpu_custom_call.1} parent=1 // pred_region
      _
    $region29: #{tpu_custom_call.1} parent=1 // pred_fallthru
      _
    %v28 = vld [vmem:[%s0] sm:$0xf]
    %v29 = vld [vmem:[%s0 + $0x4] sm:$0xf]
    %v30 = vld [vmem:[%s1] sm:$0xf]
    %v31 = vld [vmem:[%s1 + $0x4] sm:$0xf]
    %v32 = vld [vmem:[%s1 + $0x8] sm:$0xf]
    %v33 = vld [vmem:[%s1 + $0xc] sm:$0xf]
    %v34 = vld [vmem:[%s1 + $0x10] sm:$0xf]
    %v35 = vld [vmem:[%s1 + $0x14] sm:$0xf]
    %v36 = vld [vmem:[%s1 + $0x18] sm:$0xf]
    %v37 = vld [vmem:[%s1 + $0x1c] sm:$0xf]
    %v38 = vld [vmem:[%s1 + $0x20] sm:$0xf]
    %v39 = vld [vmem:[%s1 + $0x24] sm:$0xf]
    %v40 = vld [vmem:[%s1 + $0x28] sm:$0xf]
    %v41 = vld [vmem:[%s1 + $0x2c] sm:$0xf]
    %v42 = vld [vmem:[%s2] sm:$0x1]
    %v44 = vlaneseq
    %v45 = vshrl.u32 %v44, 7
    %v46 = vsub.s32 0, %v45
    %v47 = vrot.slane %v42, %v46
    %v51 = vunpack.c.l.b16 %v28
    %v52 = vunpack.c.l.b16 %v29
    %v53 = vpack.c.b16 %v52, %v51
    %v66 = vunpack.c.l.b16 %v30
    %v67 = vunpack.c.l.b16 %v31
    %v68 = vunpack.c.l.b16 %v32
    %v69 = vunpack.c.l.b16 %v33
    %v70 = vunpack.c.l.b16 %v34
    %v71 = vunpack.c.l.b16 %v35
    %v72 = vunpack.c.l.b16 %v36
    %v73 = vunpack.c.l.b16 %v37
    %v74 = vunpack.c.l.b16 %v38
    %v75 = vunpack.c.l.b16 %v39
    %v76 = vunpack.c.l.b16 %v40
    %v77 = vunpack.c.l.b16 %v41
    %v78 = vpack.c.b16 %v67, %v66
    %v79 = vpack.c.b16 %v69, %v68
    %v80 = vpack.c.b16 %v71, %v70
    %v81 = vpack.c.b16 %v73, %v72
    %v82 = vpack.c.b16 %v75, %v74
    %v83 = vpack.c.b16 %v77, %v76
    %vm90 = vcmask 785408
    %v92 = vsel %vm90, %v53, 0
    %94 = vmatprep.subr.bf16.mxu0 0
    %95 = vmatpush1.bf16.msra.mxu0 0
    %96 = vmatprep.subr.bf16.mxu0 0
    %97 = vmatpush1.bf16.msra.mxu0 0
    %98 = vmatprep.subr.bf16.mxu0 0
    %99 = vmatpush1.bf16.msra.mxu0 %v83
    %100 = vmatprep.subr.bf16.mxu0 0
    %101 = vmatpush1.bf16.msra.mxu0 %v82
    %102 = vmatprep.subr.bf16.mxu0 0
    %103 = vmatpush1.bf16.msra.mxu0 %v81
    %104 = vmatprep.subr.bf16.mxu0 0
    %105 = vmatpush1.bf16.msra.mxu0 %v80
    %106 = vmatprep.subr.bf16.mxu0 0
    %107 = vmatpush1.bf16.msra.mxu0 %v79
    %108 = vmatprep.subr.bf16.mxu0 0
    %109 = vmatpush1.bf16.msra.mxu0 %v78
    %110 = vmatprep.subr.bf16.mxu0 0
    %111 = vmatpush2.bf16.msra.mxu0 0
    %112 = vmatprep.subr.bf16.mxu0 0
    %113 = vmatpush2.bf16.msra.mxu0 0
    %114 = vmatprep.subr.bf16.mxu0 0
    %115 = vmatpush2.bf16.msra.mxu0 0
    %116 = vmatprep.subr.bf16.mxu0 0
    %117 = vmatpush2.bf16.msra.mxu0 0
    %118 = vmatprep.subr.bf16.mxu0 0
    %119 = vmatpush2.bf16.msra.mxu0 0
    %120 = vmatprep.subr.bf16.mxu0 0
    %121 = vmatpush2.bf16.msra.mxu0 0
    %122 = vmatprep.subr.bf16.mxu0 0
    %123 = vmatpush2.bf16.msra.mxu0 0
    %124 = vmatprep.subr.bf16.mxu0 0
    %125 = vmatpush2.bf16.msra.mxu0 0
    %126 = vmatprep.mubr.bf16.mxu0 0
    %127 = vmatmul.mubr.bf16.gmra.mxu0 %v92
    %v128 = vpop.f32.mrf.mxu0
    %v129 = vadd.f32 %v47, %v128
    %v130 = vpop.f32.mrf.mxu0
    %v131 = vpop.f32.mrf.mxu0
    %v132 = vadd.f32 %v47, %v131
    %v133 = vpop.f32.mrf.mxu0
    %134 = vdwg.mxu0
    %v135 = vmax.f32 %v129, 0.0
    %v136 = vmax.f32 %v132, 0.0
    %v137 = vpack.c.bf16 %v136, %v135
    %v138 = vld [vmem:[%s3] sm:$0xf]
    %v139 = vld [vmem:[%s3 + $0x4] sm:$0xf]
    %v140 = vld [vmem:[%s3 + $0x8] sm:$0xf]
    %v141 = vld [vmem:[%s3 + $0xc] sm:$0xf]
    %v142 = vld [vmem:[%s3 + $0x10] sm:$0xf]
    %v143 = vld [vmem:[%s3 + $0x14] sm:$0xf]
    %v144 = vld [vmem:[%s3 + $0x18] sm:$0xf]
    %v145 = vld [vmem:[%s3 + $0x1c] sm:$0xf]
    %v146 = vld [vmem:[%s4] sm:$0x1]
    %v148 = vlaneseq
    %v149 = vshrl.u32 %v148, 7
    %v150 = vsub.s32 0, %v149
    %v151 = vrot.slane %v146, %v150
    %v161 = vunpack.c.l.b16 %v138
    %v162 = vunpack.c.l.b16 %v139
    %v163 = vunpack.c.l.b16 %v140
    %v164 = vunpack.c.l.b16 %v141
    %v165 = vunpack.c.l.b16 %v142
    %v166 = vunpack.c.l.b16 %v143
    %v167 = vunpack.c.l.b16 %v144
    %v168 = vunpack.c.l.b16 %v145
    %v169 = vpack.c.b16 %v162, %v161
    %v170 = vpack.c.b16 %v164, %v163
    %v171 = vpack.c.b16 %v166, %v165
    %v172 = vpack.c.b16 %v168, %v167
    %vm177 = vcmask 523264
    %v179 = vsel %vm177, %v137, 0
    %181 = vmatprep.subr.bf16.mxu0 0
    %182 = vmatpush1.bf16.msra.mxu0 0
    %183 = vmatprep.subr.bf16.mxu0 0
    %184 = vmatpush1.bf16.msra.mxu0 0
    %185 = vmatprep.subr.bf16.mxu0 0
    %186 = vmatpush1.bf16.msra.mxu0 0
    %187 = vmatprep.subr.bf16.mxu0 0
    %188 = vmatpush1.bf16.msra.mxu0 0
    %189 = vmatprep.subr.bf16.mxu0 0
    %190 = vmatpush1.bf16.msra.mxu0 %v172
    %191 = vmatprep.subr.bf16.mxu0 0
    %192 = vmatpush1.bf16.msra.mxu0 %v171
    %193 = vmatprep.subr.bf16.mxu0 0
    %194 = vmatpush1.bf16.msra.mxu0 %v170
    %195 = vmatprep.subr.bf16.mxu0 0
    %196 = vmatpush1.bf16.msra.mxu0 %v169
    %197 = vmatprep.subr.bf16.mxu0 0
    %198 = vmatpush2.bf16.msra.mxu0 0
    %199 = vmatprep.subr.bf16.mxu0 0
    %200 = vmatpush2.bf16.msra.mxu0 0
    %201 = vmatprep.subr.bf16.mxu0 0
    %202 = vmatpush2.bf16.msra.mxu0 0
    %203 = vmatprep.subr.bf16.mxu0 0
    %204 = vmatpush2.bf16.msra.mxu0 0
    %205 = vmatprep.subr.bf16.mxu0 0
    %206 = vmatpush2.bf16.msra.mxu0 0
    %207 = vmatprep.subr.bf16.mxu0 0
    %208 = vmatpush2.bf16.msra.mxu0 0
    %209 = vmatprep.subr.bf16.mxu0 0
    %210 = vmatpush2.bf16.msra.mxu0 0
    %211 = vmatprep.subr.bf16.mxu0 0
    %212 = vmatpush2.bf16.msra.mxu0 0
    %213 = vmatprep.mubr.bf16.mxu0 0
    %214 = vmatmul.mubr.bf16.gmra.mxu0 %v179
    %v215 = vpop.f32.mrf.mxu0
    %v216 = vadd.f32 %v151, %v215
    %v217 = vpop.f32.mrf.mxu0
    %v218 = vpop.f32.mrf.mxu0
    %v219 = vadd.f32 %v151, %v218
    %v220 = vpop.f32.mrf.mxu0
    %221 = vdwg.mxu0
    %v222 = vpack.c.bf16 %v219, %v216
    %v223 = vld [vmem:[%s5] sm:$0xf]
    %v224 = vld [vmem:[%s5 + $0x4] sm:$0xf]
    %v225 = vld [vmem:[%s5 + $0x8] sm:$0xf]
    %v226 = vld [vmem:[%s5 + $0xc] sm:$0xf]
    %v227 = vld [vmem:[%s6] sm:$0x1]
    %v229 = vlaneseq
    %v230 = vshrl.u32 %v229, 7
    %v231 = vsub.s32 0, %v230
    %v232 = vrot.slane %v227, %v231
    %v238 = vunpack.c.l.b16 %v223
    %v239 = vunpack.c.l.b16 %v224
    %v240 = vunpack.c.l.b16 %v225
    %v241 = vunpack.c.l.b16 %v226
    %v242 = vpack.c.b16 %v239, %v238
    %v243 = vpack.c.b16 %v241, %v240
    %vm246 = vcmask 261120
    %v248 = vsel %vm246, %v222, 0
    %250 = vmatprep.subr.bf16.mxu0 0
    %251 = vmatpush1.bf16.msra.mxu0 0
    %252 = vmatprep.subr.bf16.mxu0 0
    %253 = vmatpush1.bf16.msra.mxu0 0
    %254 = vmatprep.subr.bf16.mxu0 0
    %255 = vmatpush1.bf16.msra.mxu0 0
    %256 = vmatprep.subr.bf16.mxu0 0
    %257 = vmatpush1.bf16.msra.mxu0 0
    %258 = vmatprep.subr.bf16.mxu0 0
    %259 = vmatpush1.bf16.msra.mxu0 0
    %260 = vmatprep.subr.bf16.mxu0 0
    %261 = vmatpush1.bf16.msra.mxu0 0
    %262 = vmatprep.subr.bf16.mxu0 0
    %263 = vmatpush1.bf16.msra.mxu0 %v243
    %264 = vmatprep.subr.bf16.mxu0 0
    %265 = vmatpush1.bf16.msra.mxu0 %v242
    %266 = vmatprep.subr.bf16.mxu0 0
    %267 = vmatpush2.bf16.msra.mxu0 0
    %268 = vmatprep.subr.bf16.mxu0 0
    %269 = vmatpush2.bf16.msra.mxu0 0
    %270 = vmatprep.subr.bf16.mxu0 0
    %271 = vmatpush2.bf16.msra.mxu0 0
    %272 = vmatprep.subr.bf16.mxu0 0
    %273 = vmatpush2.bf16.msra.mxu0 0
    %274 = vmatprep.subr.bf16.mxu0 0
    %275 = vmatpush2.bf16.msra.mxu0 0
    %276 = vmatprep.subr.bf16.mxu0 0
    %277 = vmatpush2.bf16.msra.mxu0 0
    %278 = vmatprep.subr.bf16.mxu0 0
    %279 = vmatpush2.bf16.msra.mxu0 0
    %280 = vmatprep.subr.bf16.mxu0 0
    %281 = vmatpush2.bf16.msra.mxu0 0
    %282 = vmatprep.mubr.bf16.mxu0 0
    %283 = vmatmul.mubr.bf16.gmra.mxu0 %v248
    %v284 = vpop.f32.mrf.mxu0
    %v285 = vadd.f32 %v232, %v284
    %v286 = vpop.f32.mrf.mxu0
    %v287 = vpop.f32.mrf.mxu0
    %v288 = vadd.f32 %v232, %v287
    %v289 = vpop.f32.mrf.mxu0
    %290 = vdwg.mxu0
    %vm291 = vcmp.gt.f32.partialorder %v285, 0.0
    %vm292 = vcmp.gt.f32.partialorder %v288, 0.0
    %v293 = vmul.f32 %v285, 0.01
    %v294 = vmul.f32 %v288, 0.01
    %v295 = vsel %vm291, %v285, %v293
    %v296 = vsel %vm292, %v288, %v294
    %297 = vst [vmem:[#allocation2] sm:$0xff] %v295
    %298 = vst [vmem:[#allocation2 + $0x8] sm:$0xff] %v296
    // Predicated region
    $region30: #{tpu_custom_call.1} parent=1 // pred_check
      _
    $region31: #{tpu_custom_call.1} parent=1 // pred_check_branch
      %300 = sbr.rel (0) target = $region33
    $region32: #{tpu_custom_call.1} parent=1 // pred_region
      %s302 = ssub.s32 256, 256
      %303 = vsyncadd [#allocation3], %s302
      %s304 = sshll.u32 [#allocation2], 4
      %s305 = int_to_ptr.vmem [resolvable:$true] %s304
      %310 = dma.vmem_to_hbm [thread:$0]  %s305, 256, %s7, [#allocation3], 128, 128, 8
    $region33: #{tpu_custom_call.1} parent=1 // pred_fallthru
      _
    // Predicated region
    $region34: #{tpu_custom_call.1} parent=1 // pred_check
      _
    $region35: #{tpu_custom_call.1} parent=1 // pred_check_branch
      %312 = sbr.rel (0) target = $region37
    $region36: #{tpu_custom_call.1} parent=1 // pred_region
      %313 = dma.done [#allocation3], 256
    $region37: #{tpu_custom_call.1} parent=1 // pred_fallthru
      _
    %314 = vsyncpa [#allocation3], 1

</llo_original>
